<compile_context>
chip_gen: v7x
topology: tpu7x:2x2x1
jax: 0.10.0
libtpu: 0.0.40
codegen_flags: <defaults>
</compile_context>

<pallas_src>
import jax
import jax.numpy as jnp
from jax.experimental import pallas as pl
from jax.experimental.pallas import tpu as pltpu

# ---- module hyper-parameters (defaults: n_hidden=1, latent_dim=32) ----------
INPUT_DIM    = 9
OUTPUT_DIM   = 4
LATENT_DIM   = 32
POSE_EMB_DIM = LATENT_DIM // 4          # 8
HALF_DIM     = POSE_EMB_DIM // 2        # 4
HEAD_DIM     = INPUT_DIM - 1            # columns x[:, :-1]
MLP_IN       = HEAD_DIM + POSE_EMB_DIM  # = input_dim + pose_emb_dim - 1 = 16


def _round_up(n, m):
    return ((n + m - 1) // m) * m


def mlp_pos_emb_kernel(x_ref, freq_ref,
                       w1_ref, b1_ref, a1_ref,
                       w2_ref, b2_ref, a2_ref,
                       w3_ref, b3_ref,
                       o_ref):
    x = x_ref[...]                                   # (INPUT_DIM, TB)
    x_head = x[:HEAD_DIM, :]                         # (8, TB)  == x[:, :-1].T
    phase = x[HEAD_DIM:HEAD_DIM + 1, :]              # (1, TB)  == x[:, -1]

    # Sinusoidal embedding, built directly as one aligned (8, TB) block:
    # rows 0..3 -> sin(phase * f_i), rows 4..7 -> cos(phase * f_i).
    arg = freq_ref[...] * phase                      # (POSE_EMB_DIM, TB)
    row = jax.lax.broadcasted_iota(jnp.int32, arg.shape, 0)
    emb = jnp.where(row < HALF_DIM, jnp.sin(arg), jnp.cos(arg))

    # concat of two 8-row sublane-aligned blocks -> single K=16 matmul.
    xin = jnp.concatenate([x_head, emb], axis=0)     # (MLP_IN, TB)

    a1 = a1_ref[0]                                   # PReLU slopes from SMEM
    a2 = a2_ref[0]

    h = jnp.dot(w1_ref[...], xin,
                preferred_element_type=jnp.float32) + b1_ref[...]   # (32, TB)
    h = jnp.where(h >= 0, h, a1 * h)                 # PReLU (shared slope)

    # Dropout(p=0.0) is the identity.
    h = jnp.dot(w2_ref[...], h,
                preferred_element_type=jnp.float32) + b2_ref[...]   # (32, TB)
    h = jnp.where(h >= 0, h, a2 * h)

    o_ref[...] = (jnp.dot(w3_ref[...], h,
                          preferred_element_type=jnp.float32)
                  + b3_ref[...])                     # (4, TB) lane-dense store


def mlp_pos_emb(x, params, *, block_b=2048):
    """x: (B, INPUT_DIM) float32  ->  (B, OUTPUT_DIM) float32."""
    assert block_b % 128 == 0
    B = x.shape[0]
    freqs, w1, b1, a1, w2, b2, a2, w3, b3 = params

    # Batch tile: multiple of 128 lanes; pad B up so the grid divides evenly.
    TB = min(block_b, _round_up(B, 128))
    Bp = _round_up(B, TB)

    # Layout plumbing (wrapper side): (features, batch), weights pre-transposed.
    x_t = jnp.pad(x.T, ((0, 0), (0, Bp - B)))        # (INPUT_DIM, Bp)
    w1t = w1.T                                        # (LATENT, MLP_IN)
    w2t = w2.T                                        # (LATENT, LATENT)
    w3t = w3.T                                        # (OUTPUT, LATENT)
    b1t = b1.reshape(LATENT_DIM, 1)
    b2t = b2.reshape(LATENT_DIM, 1)
    b3t = b3.reshape(OUTPUT_DIM, 1)
    # rows 0..3 sin-frequencies, rows 4..7 cos-frequencies
    f = freqs.reshape(-1)
    freqs8 = jnp.concatenate([f, f]).reshape(POSE_EMB_DIM, 1)
    a1s = a1.reshape(1)
    a2s = a2.reshape(1)

    const = lambda i: (0, 0)
    smem = pl.BlockSpec(memory_space=pltpu.MemorySpace.SMEM)

    out_t = pl.pallas_call(
        mlp_pos_emb_kernel,
        out_shape=jax.ShapeDtypeStruct((OUTPUT_DIM, Bp), jnp.float32),
        grid=(Bp // TB,),
        in_specs=[
            pl.BlockSpec((INPUT_DIM, TB), lambda i: (0, i)),       # x (streamed)
            pl.BlockSpec((POSE_EMB_DIM, 1), const),                # freqs
            pl.BlockSpec((LATENT_DIM, MLP_IN), const),             # w1^T
            pl.BlockSpec((LATENT_DIM, 1), const),                  # b1
            smem,                                                  # a1 (scalar)
            pl.BlockSpec((LATENT_DIM, LATENT_DIM), const),         # w2^T
            pl.BlockSpec((LATENT_DIM, 1), const),                  # b2
            smem,                                                  # a2 (scalar)
            pl.BlockSpec((OUTPUT_DIM, LATENT_DIM), const),         # w3^T
            pl.BlockSpec((OUTPUT_DIM, 1), const),                  # b3
        ],
        out_specs=pl.BlockSpec((OUTPUT_DIM, TB), lambda i: (0, i)),
        compiler_params=pltpu.CompilerParams(
            dimension_semantics=("parallel",)),
    )(x_t, freqs8, w1t, b1t, a1s, w2t, b2t, a2s, w3t, b3t)

    return out_t[:, :B].T


# ---- deterministic parameter construction -----------------------------------
def init_params(key):
    ks = jax.random.split(key, 3)

    def linear(k, fan_in, fan_out):
        kw, kb = jax.random.split(k)
        bound = 1.0 / float(fan_in) ** 0.5
        w = jax.random.uniform(kw, (fan_in, fan_out), jnp.float32, -bound, bound)
        b = jax.random.uniform(kb, (1, fan_out), jnp.float32, -bound, bound)
        return w, b

    w1, b1 = linear(ks[0], MLP_IN, LATENT_DIM)
    w2, b2 = linear(ks[1], LATENT_DIM, LATENT_DIM)
    w3, b3 = linear(ks[2], LATENT_DIM, OUTPUT_DIM)
    a1 = jnp.full((1, 1), 0.25, jnp.float32)   # PReLU weights (PyTorch default)
    a2 = jnp.full((1, 1), 0.25, jnp.float32)

    # SinusoidalPosEmb frequencies: 1 / 0.001 ** (2 * (i // 2) / half_dim)
    i = jnp.arange(HALF_DIM)
    freqs = (1.0 / (0.001 ** (2.0 * (i // 2) / HALF_DIM))).astype(jnp.float32)
    freqs = freqs.reshape(1, HALF_DIM)
    return freqs, w1, b1, a1, w2, b2, a2, w3, b3


# ---- pure-JAX reference (mirrors the PyTorch forward exactly) ----------------
def reference(x, params):
    freqs, w1, b1, a1, w2, b2, a2, w3, b3 = params
    hp = jax.lax.Precision.HIGHEST
    phase = x[:, -1]
    arg = phase[:, None] * freqs[0][None, :]
    emb = jnp.concatenate([jnp.sin(arg), jnp.cos(arg)], axis=-1)
    xin = jnp.concatenate([x[:, :-1], emb], axis=1)
    h = jnp.dot(xin, w1, precision=hp) + b1
    h = jnp.where(h >= 0, h, a1 * h)
    h = jnp.dot(h, w2, precision=hp) + b2
    h = jnp.where(h >= 0, h, a2 * h)
    return jnp.dot(h, w3, precision=hp) + b3


if __name__ == "__main__":
    key = jax.random.PRNGKey(0)
    kx, kp = jax.random.split(key)
    params = init_params(kp)

    # Small-batch path (single grid step; batch padded to one 128-lane block).
    B = 8
    x = jax.random.uniform(kx, (B, INPUT_DIM), jnp.float32)
    out = jax.block_until_ready(mlp_pos_emb(x, params))
    ref = reference(x, params)
    assert out.shape == (B, OUTPUT_DIM)
    assert jnp.allclose(out, ref, rtol=1e-3, atol=1e-3), (out, ref)

    # Multi-block path: grid of 3, exercises padding + pipelined batch tiles.
    B2 = 300
    x2 = jax.random.uniform(jax.random.PRNGKey(1), (B2, INPUT_DIM), jnp.float32)
    out2 = jax.block_until_ready(mlp_pos_emb(x2, params, block_b=128))
    ref2 = reference(x2, params)
    assert out2.shape == (B2, OUTPUT_DIM)
    assert jnp.allclose(out2, ref2, rtol=1e-3, atol=1e-3), (out2, ref2)

    print("KERNEL_OK")
</pallas_src>

<mosaic_0001>
module attributes {stable_mosaic.version = 11 : i64} {
  func.func @mlp_pos_emb_kernel(%arg0: i32, %arg1: memref<9x128xf32, #tpu.memory_space<vmem>>, %arg2: memref<8x1xf32, #tpu.memory_space<vmem>>, %arg3: memref<32x16xf32, #tpu.memory_space<vmem>>, %arg4: memref<32x1xf32, #tpu.memory_space<vmem>>, %arg5: memref<1xf32, #tpu.memory_space<smem>>, %arg6: memref<32x32xf32, #tpu.memory_space<vmem>>, %arg7: memref<32x1xf32, #tpu.memory_space<vmem>>, %arg8: memref<1xf32, #tpu.memory_space<smem>>, %arg9: memref<4x32xf32, #tpu.memory_space<vmem>>, %arg10: memref<4x1xf32, #tpu.memory_space<vmem>>, %arg11: memref<4x128xf32, #tpu.memory_space<vmem>>) attributes {dimension_semantics = [#tpu.dimension_semantics<parallel>], iteration_bounds = array<i64: 1>, scalar_prefetch = 0 : i64, scratch_operands = 0 : i64, tpu.core_type = #tpu.core_type<tc>, window_params = [{transform_indices = @transform_0, window_bounds = array<i64: 9, 128>}, {pipeline_mode = #tpu.pipeline_mode<synchronous>, transform_indices = @transform_1, window_bounds = array<i64: 8, 1>}, {pipeline_mode = #tpu.pipeline_mode<synchronous>, transform_indices = @transform_2, window_bounds = array<i64: 32, 16>}, {pipeline_mode = #tpu.pipeline_mode<synchronous>, transform_indices = @transform_3, window_bounds = array<i64: 32, 1>}, {transform_indices = @transform_4, window_bounds = array<i64: 1>}, {pipeline_mode = #tpu.pipeline_mode<synchronous>, transform_indices = @transform_5, window_bounds = array<i64: 32, 32>}, {pipeline_mode = #tpu.pipeline_mode<synchronous>, transform_indices = @transform_6, window_bounds = array<i64: 32, 1>}, {transform_indices = @transform_7, window_bounds = array<i64: 1>}, {pipeline_mode = #tpu.pipeline_mode<synchronous>, transform_indices = @transform_8, window_bounds = array<i64: 4, 32>}, {pipeline_mode = #tpu.pipeline_mode<synchronous>, transform_indices = @transform_9, window_bounds = array<i64: 4, 1>}, {transform_indices = @transform_10, window_bounds = array<i64: 4, 128>}]} {
    %c0 = arith.constant 0 : index
    %c0_0 = arith.constant 0 : index
    %0 = vector.load %arg1[%c0, %c0_0] : memref<9x128xf32, #tpu.memory_space<vmem>>, vector<9x128xf32>
    %1 = vector.extract_strided_slice %0 {offsets = [0, 0], sizes = [8, 128], strides = [1, 1]} : vector<9x128xf32> to vector<8x128xf32>
    %2 = vector.extract_strided_slice %0 {offsets = [8, 0], sizes = [1, 128], strides = [1, 1]} : vector<9x128xf32> to vector<1x128xf32>
    %c0_1 = arith.constant 0 : index
    %c0_2 = arith.constant 0 : index
    %3 = vector.load %arg2[%c0_1, %c0_2] : memref<8x1xf32, #tpu.memory_space<vmem>>, vector<8x1xf32>
    %4 = vector.broadcast %3 : vector<8x1xf32> to vector<8x128xf32>
    %5 = vector.broadcast %2 : vector<1x128xf32> to vector<8x128xf32>
    %6 = arith.mulf %4, %5 : vector<8x128xf32>
    %7 = tpu.iota {dimensions = array<i32: 0>} : vector<8x128xi32>
    %c4_i32 = arith.constant 4 : i32
    %8 = vector.broadcast %c4_i32 : i32 to vector<8x128xi32>
    %9 = arith.cmpi slt, %7, %8 : vector<8x128xi32>
    %10 = math.sin %6 : vector<8x128xf32>
    %11 = math.cos %6 : vector<8x128xf32>
    %12 = arith.select %9, %10, %11 : vector<8x128xi1>, vector<8x128xf32>
    %13 = tpu.concatenate %1, %12 in 0 : vector<8x128xf32>, vector<8x128xf32> -> vector<16x128xf32>
    %c0_3 = arith.constant 0 : index
    %14 = memref.load %arg5[%c0_3] : memref<1xf32, #tpu.memory_space<smem>>
    %c0_4 = arith.constant 0 : index
    %15 = memref.load %arg8[%c0_4] : memref<1xf32, #tpu.memory_space<smem>>
    %c0_5 = arith.constant 0 : index
    %c0_6 = arith.constant 0 : index
    %16 = vector.load %arg3[%c0_5, %c0_6] : memref<32x16xf32, #tpu.memory_space<vmem>>, vector<32x16xf32>
    %cst = arith.constant dense<0.000000e+00> : vector<32x128xf32>
    %17 = tpu.matmul %16, %13, %cst {dimension_numbers = #tpu.dot_dimension_numbers<[1], [0], [0], [1], [0, 0, 1, 1], [], []>} : vector<32x16xf32>, vector<16x128xf32>, vector<32x128xf32> -> vector<32x128xf32>
    %c0_7 = arith.constant 0 : index
    %c0_8 = arith.constant 0 : index
    %18 = vector.load %arg4[%c0_7, %c0_8] : memref<32x1xf32, #tpu.memory_space<vmem>>, vector<32x1xf32>
    %19 = vector.broadcast %18 : vector<32x1xf32> to vector<32x128xf32>
    %20 = arith.addf %17, %19 : vector<32x128xf32>
    %cst_9 = arith.constant 0.000000e+00 : f32
    %21 = vector.broadcast %cst_9 : f32 to vector<32x128xf32>
    %22 = arith.cmpf oge, %20, %21 : vector<32x128xf32>
    %23 = vector.broadcast %14 : f32 to vector<32x128xf32>
    %24 = arith.mulf %23, %20 : vector<32x128xf32>
    %25 = arith.select %22, %20, %24 : vector<32x128xi1>, vector<32x128xf32>
    %c0_10 = arith.constant 0 : index
    %c0_11 = arith.constant 0 : index
    %26 = vector.load %arg6[%c0_10, %c0_11] : memref<32x32xf32, #tpu.memory_space<vmem>>, vector<32x32xf32>
    %cst_12 = arith.constant dense<0.000000e+00> : vector<32x128xf32>
    %27 = tpu.matmul %26, %25, %cst_12 {dimension_numbers = #tpu.dot_dimension_numbers<[1], [0], [0], [1], [0, 0, 1, 1], [], []>} : vector<32x32xf32>, vector<32x128xf32>, vector<32x128xf32> -> vector<32x128xf32>
    %c0_13 = arith.constant 0 : index
    %c0_14 = arith.constant 0 : index
    %28 = vector.load %arg7[%c0_13, %c0_14] : memref<32x1xf32, #tpu.memory_space<vmem>>, vector<32x1xf32>
    %29 = vector.broadcast %28 : vector<32x1xf32> to vector<32x128xf32>
    %30 = arith.addf %27, %29 : vector<32x128xf32>
    %cst_15 = arith.constant 0.000000e+00 : f32
    %31 = vector.broadcast %cst_15 : f32 to vector<32x128xf32>
    %32 = arith.cmpf oge, %30, %31 : vector<32x128xf32>
    %33 = vector.broadcast %15 : f32 to vector<32x128xf32>
    %34 = arith.mulf %33, %30 : vector<32x128xf32>
    %35 = arith.select %32, %30, %34 : vector<32x128xi1>, vector<32x128xf32>
    %c0_16 = arith.constant 0 : index
    %c0_17 = arith.constant 0 : index
    %36 = vector.load %arg9[%c0_16, %c0_17] : memref<4x32xf32, #tpu.memory_space<vmem>>, vector<4x32xf32>
    %cst_18 = arith.constant dense<0.000000e+00> : vector<4x128xf32>
    %37 = tpu.matmul %36, %35, %cst_18 {dimension_numbers = #tpu.dot_dimension_numbers<[1], [0], [0], [1], [0, 0, 1, 1], [], []>} : vector<4x32xf32>, vector<32x128xf32>, vector<4x128xf32> -> vector<4x128xf32>
    %c0_19 = arith.constant 0 : index
    %c0_20 = arith.constant 0 : index
    %38 = vector.load %arg10[%c0_19, %c0_20] : memref<4x1xf32, #tpu.memory_space<vmem>>, vector<4x1xf32>
    %39 = vector.broadcast %38 : vector<4x1xf32> to vector<4x128xf32>
    %40 = arith.addf %37, %39 : vector<4x128xf32>
    %c0_21 = arith.constant 0 : index
    %c0_22 = arith.constant 0 : index
    %41 = vector.load %arg11[%c0_21, %c0_22] : memref<4x128xf32, #tpu.memory_space<vmem>>, vector<4x128xf32>
    tpu.vector_store %arg11[%c0_21, %c0_22], %40 {strides = array<i32>} : memref<4x128xf32, #tpu.memory_space<vmem>>, vector<4x128xf32>,
    return
  }
  func.func @transform_0(%arg0: i32) -> (i32, i32) {
    %c0_i32 = arith.constant 0 : i32
    %c0_i32_0 = arith.constant 0 : i32
    return %c0_i32, %arg0 : i32, i32
  }
  func.func @transform_1(%arg0: i32) -> (i32, i32) {
    %c0_i32 = arith.constant 0 : i32
    %c0_i32_0 = arith.constant 0 : i32
    %c0_i32_1 = arith.constant 0 : i32
    return %c0_i32, %c0_i32_0 : i32, i32
  }
  func.func @transform_2(%arg0: i32) -> (i32, i32) {
    %c0_i32 = arith.constant 0 : i32
    %c0_i32_0 = arith.constant 0 : i32
    %c0_i32_1 = arith.constant 0 : i32
    return %c0_i32, %c0_i32_0 : i32, i32
  }
  func.func @transform_3(%arg0: i32) -> (i32, i32) {
    %c0_i32 = arith.constant 0 : i32
    %c0_i32_0 = arith.constant 0 : i32
    %c0_i32_1 = arith.constant 0 : i32
    return %c0_i32, %c0_i32_0 : i32, i32
  }
  func.func @transform_4(%arg0: i32) -> i32 {
    %c0_i32 = arith.constant 0 : i32
    %c0_i32_0 = arith.constant 0 : i32
    return %c0_i32 : i32
  }
  func.func @transform_5(%arg0: i32) -> (i32, i32) {
    %c0_i32 = arith.constant 0 : i32
    %c0_i32_0 = arith.constant 0 : i32
    %c0_i32_1 = arith.constant 0 : i32
    return %c0_i32, %c0_i32_0 : i32, i32
  }
  func.func @transform_6(%arg0: i32) -> (i32, i32) {
    %c0_i32 = arith.constant 0 : i32
    %c0_i32_0 = arith.constant 0 : i32
    %c0_i32_1 = arith.constant 0 : i32
    return %c0_i32, %c0_i32_0 : i32, i32
  }
  func.func @transform_7(%arg0: i32) -> i32 {
    %c0_i32 = arith.constant 0 : i32
    %c0_i32_0 = arith.constant 0 : i32
    return %c0_i32 : i32
  }
  func.func @transform_8(%arg0: i32) -> (i32, i32) {
    %c0_i32 = arith.constant 0 : i32
    %c0_i32_0 = arith.constant 0 : i32
    %c0_i32_1 = arith.constant 0 : i32
    return %c0_i32, %c0_i32_0 : i32, i32
  }
  func.func @transform_9(%arg0: i32) -> (i32, i32) {
    %c0_i32 = arith.constant 0 : i32
    %c0_i32_0 = arith.constant 0 : i32
    %c0_i32_1 = arith.constant 0 : i32
    return %c0_i32, %c0_i32_0 : i32, i32
  }
  func.func @transform_10(%arg0: i32) -> (i32, i32) {
    %c0_i32 = arith.constant 0 : i32
    %c0_i32_0 = arith.constant 0 : i32
    return %c0_i32, %arg0 : i32, i32
  }
}

</mosaic_0001>

<llo_original>
// kernel: tpu_custom_call.1
$region0: #{tpu_custom_call.1}
  #allocation0 [shape = 'u32[]', space=smem, size = 0x4, offset = 0x4, fixed_abs, tag = 'smem constant byte address 0x4 - core index']
  #allocation1 [shape = 'u32[144,128]{1,0:T(1,128)}', space=vmem, size = 0x12000, scoped, tag = 'internal scratch']
  #allocation2 [shape = 'f32[1]{0:T(128)S(6)}', space=smem, size = 0x200, scoped, tag = 'scoped memory for tpu_custom_call.1']
  #allocation3 [shape = 'f32[1]{0:T(128)S(6)}', space=smem, size = 0x200, scoped, tag = 'scoped memory for tpu_custom_call.1']
  %s0 = inlined_call_operand.vmem [shape: f32[9,128], index: 0, kind: input, shape index: {}]
  %s1 = inlined_call_operand.vmem [shape: f32[8,1], index: 1, kind: input, shape index: {}]
  %s2 = inlined_call_operand.vmem [shape: f32[32,16], index: 2, kind: input, shape index: {}]
  %s3 = inlined_call_operand.vmem [shape: f32[32,1], index: 3, kind: input, shape index: {}]
  %s4 = inlined_call_operand.<no memory space> [shape: f32[1], index: 4, kind: input, shape index: {}]
  %s5 = inlined_call_operand.vmem [shape: f32[32,32], index: 5, kind: input, shape index: {}]
  %s6 = inlined_call_operand.vmem [shape: f32[32,1], index: 6, kind: input, shape index: {}]
  %s7 = inlined_call_operand.<no memory space> [shape: f32[1], index: 7, kind: input, shape index: {}]
  %s8 = inlined_call_operand.vmem [shape: f32[4,32], index: 8, kind: input, shape index: {}]
  %s9 = inlined_call_operand.vmem [shape: f32[4,1], index: 9, kind: input, shape index: {}]
  %s10 = inlined_call_operand.hbm [shape: f32[4,128], index: 10, kind: output, shape index: {}]
  %s11 = sld [smem:[#allocation0]]
  $region50: #{tpu_custom_call.1} parent=0
    _
  %s13 = ssub.s32 1, %s11
  %s14 = scalar_select 0, %s13, %s11
  %15 = sst [smem:[#allocation2]] %s4
  %16 = sst [smem:[#allocation3]] %s7
  $region1: #{tpu_custom_call.1} parent=0
    #allocation4 [shape = 'u8[2048]{0}', space=vmem, size = 0x800, scoped, tag = 'output window, operand 0, single buffered']
    #allocation5 [shape = 's32[1]{0}', space=sflag, size = 0x4, scoped, tag = 'scoped memory for tpu_custom_call.1']
    %17 = vsyncpa [#allocation5], 0
    // Predicated region
    $region2: #{tpu_custom_call.1} parent=1 // pred_check
      _
    $region3: #{tpu_custom_call.1} parent=1 // pred_check_branch
      %19 = sbr.rel (0) target = $region5
    $region4: #{tpu_custom_call.1} parent=1 // pred_region
      _
    $region5: #{tpu_custom_call.1} parent=1 // pred_fallthru
      _
    // Predicated region
    $region6: #{tpu_custom_call.1} parent=1 // pred_check
      _
    $region7: #{tpu_custom_call.1} parent=1 // pred_check_branch
      %21 = sbr.rel (0) target = $region9
    $region8: #{tpu_custom_call.1} parent=1 // pred_region
      _
    $region9: #{tpu_custom_call.1} parent=1 // pred_fallthru
      _
    // Predicated region
    $region10: #{tpu_custom_call.1} parent=1 // pred_check
      _
    $region11: #{tpu_custom_call.1} parent=1 // pred_check_branch
      %23 = sbr.rel (0) target = $region13
    $region12: #{tpu_custom_call.1} parent=1 // pred_region
      _
    $region13: #{tpu_custom_call.1} parent=1 // pred_fallthru
      _
    // Predicated region
    $region14: #{tpu_custom_call.1} parent=1 // pred_check
      _
    $region15: #{tpu_custom_call.1} parent=1 // pred_check_branch
      %25 = sbr.rel (0) target = $region17
    $region16: #{tpu_custom_call.1} parent=1 // pred_region
      _
    $region17: #{tpu_custom_call.1} parent=1 // pred_fallthru
      _
    // Predicated region
    $region18: #{tpu_custom_call.1} parent=1 // pred_check
      _
    $region19: #{tpu_custom_call.1} parent=1 // pred_check_branch
      %27 = sbr.rel (0) target = $region21
    $region20: #{tpu_custom_call.1} parent=1 // pred_region
      _
    $region21: #{tpu_custom_call.1} parent=1 // pred_fallthru
      _
    // Predicated region
    $region22: #{tpu_custom_call.1} parent=1 // pred_check
      _
    $region23: #{tpu_custom_call.1} parent=1 // pred_check_branch
      %29 = sbr.rel (0) target = $region25
    $region24: #{tpu_custom_call.1} parent=1 // pred_region
      _
    $region25: #{tpu_custom_call.1} parent=1 // pred_fallthru
      _
    // Predicated region
    $region26: #{tpu_custom_call.1} parent=1 // pred_check
      _
    $region27: #{tpu_custom_call.1} parent=1 // pred_check_branch
      %31 = sbr.rel (0) target = $region29
    $region28: #{tpu_custom_call.1} parent=1 // pred_region
      _
    $region29: #{tpu_custom_call.1} parent=1 // pred_fallthru
      _
    // Predicated region
    $region30: #{tpu_custom_call.1} parent=1 // pred_check
      _
    $region31: #{tpu_custom_call.1} parent=1 // pred_check_branch
      %33 = sbr.rel (0) target = $region33
    $region32: #{tpu_custom_call.1} parent=1 // pred_region
      _
    $region33: #{tpu_custom_call.1} parent=1 // pred_fallthru
      _
    // Predicated region
    $region34: #{tpu_custom_call.1} parent=1 // pred_check
      _
    $region35: #{tpu_custom_call.1} parent=1 // pred_check_branch
      %35 = sbr.rel (0) target = $region37
    $region36: #{tpu_custom_call.1} parent=1 // pred_region
      _
    $region37: #{tpu_custom_call.1} parent=1 // pred_fallthru
      _
    // Predicated region
    $region38: #{tpu_custom_call.1} parent=1 // pred_check
      _
    $region39: #{tpu_custom_call.1} parent=1 // pred_check_branch
      %37 = sbr.rel (0) target = $region41
    $region40: #{tpu_custom_call.1} parent=1 // pred_region
      _
    $region41: #{tpu_custom_call.1} parent=1 // pred_fallthru
      _
    %v38 = vld [vmem:[%s0] sm:$0xff]
    %v39 = vld [vmem:[%s0 + $0x8] sm:$0x1]
    %v40 = vld [vmem:[%s1] sm:$0xff]
    %42 = vset.pattern.permute.xlu0 0
    %43 = vperm.xlu0 %42, %v40
    %v44 = vpop.permute.xlu0 %43
    %v46 = vlaneseq
    %v47 = vshrl.u32 %v46, 7
    %v48 = vsub.s32 0, %v47
    %v49 = vrot.slane %v39, %v48
    %v50 = vmul.f32 %v44, %v49
    %v51 = vlaneseq
    %v52 = vshrl.u32 %v51, 7
    %vm53 = vcmp.lt.s32.totalorder %v52, 4
    %v54 = vand.u32 2147483647, %v50
    %vm55 = vcmp.le.f32.partialorder %v54, 0.7853982
    %vm56 = vcmp.lt.s32.totalorder %v50, 0
    %v57 = vand.u32 %v50, 2139095040
    %v58 = vshrl.u32 %v57, 23
    %v59 = vsub.s32 %v58, 127
    %v60 = vand.u32 2147483647, %v50
    %v61 = vand.u32 %v60, 8388607
    %v62 = vor.u32 %v61, 8388608
    %v63 = vsub.s32 0, %v62
    %v64 = vadd.s32 %v59, 1
    %vm65 = vcmp.gt.s32.totalorder %v64, 0
    %v66 = vsel %vm65, %v64, 0
    %v67 = vshrl.u32 %v66, 5
    %v68 = vand.u32 %v66, 31
    %v69 = vsub.s32 32, %v68
    %v70 = vshrl.u32 683565275, %v69
    %v71 = vshll.u32 683565275, %v68
    %v72 = vshrl.u32 2475754826, %v69
    %v73 = vor.u32 %v71, %v72
    %v74 = vshll.u32 2475754826, %v68
    %v75 = vshrl.u32 2131351028, %v69
    %v76 = vor.u32 %v74, %v75
    %v77 = vshll.u32 2131351028, %v68
    %v78 = vshrl.u32 2102212464, %v69
    %v79 = vor.u32 %v77, %v78
    %v80 = vshll.u32 2102212464, %v68
    %v81 = vshrl.u32 920167782, %v69
    %v82 = vor.u32 %v80, %v81
    %v83 = vshll.u32 920167782, %v68
    %v84 = vshrl.u32 1326507024, %v69
    %v85 = vor.u32 %v83, %v84
    %vm86 = vcmp.lt.s32.totalorder %v67, 1
    %vm87 = vcmp.lt.s32.totalorder %v67, 2
    %vm88 = vcmp.lt.s32.totalorder %v67, 3
    %vm89 = vcmp.lt.s32.totalorder %v67, 4
    %v90 = vsel %vm86, %v70, %v73
    %v91 = vsel %vm89, %v79, 2102212464
    %v92 = vsel %vm88, %v76, %v91
    %v93 = vsel %vm87, %v90, %v92
    %v94 = vsel %vm86, %v73, %v76
    %v95 = vsel %vm89, %v82, 920167782
    %v96 = vsel %vm88, %v79, %v95
    %v97 = vsel %vm87, %v94, %v96
    %v98 = vsel %vm86, %v76, %v79
    %v99 = vsel %vm89, %v85, 1326507024
    %v100 = vsel %vm88, %v82, %v99
    %v101 = vsel %vm87, %v98, %v100
    %v102 = vshll.u32 %v62, 8
    %v103 = vmul.u32.u64.compose %v102, %v101
    %v104 = vextract.low.u32 %v103
    %v105 = vextract.high.u32 %v103
    %v106 = vmul.u32.u64.compose %v102, %v97
    %v107 = vextract.low.u32 %v106
    %v108 = vextract.high.u32 %v106
    %v109 = vmul.u32 %v102, %v93
    %v110 = vadd.s32 %v105, %v107
    %vm111 = vc.u32 %v105, %v107
    %v112 = vadd.s32 %v108, 1
    %v113 = vsel %vm111, %v112, %v108
    %v114 = vadd.s32 %v109, %v113
    %v115 = vadd.s32 %v114, 536870912
    %v116 = vshrl.u32 %v115, 30
    %v117 = vshll.u32 %v116, 30
    %v118 = vsub.s32 %v114, %v117
    %vm119 = vcmp.lt.s32.totalorder %v118, 0
    %v120 = vsub.s32 0, %v118
    %v121 = vsel %vm119, %v120, %v118
    %v122 = vclz %v121
    %v123 = vsub.s32 %v122, 2
    %vm124 = vcmp.gt.s32.totalorder 0, %v123
    %v125 = vsel %vm124, 0, %v123
    %v126 = vsub.s32 32, %v125
    %v127 = vshll.u32 %v118, %v125
    %v128 = vshrl.u32 %v110, %v126
    %v129 = vor.u32 %v127, %v128
    %v130 = vsub.s32 4294967266, %v125
    %v131 = vadd.s32 %v130, 127
    %v132 = vshll.u32 %v131, 23
    %v133 = vor.u32 4788187, %v132
    %v134 = vand.u32 2147483647, %v133
    %v136 = vcvt.s32.f32 %v129
    %v137 = vmul.f32 %v136, %v134
    %v138 = vxor.u32 %v137, 2147483648
    %v139 = vsel %vm56, %v138, %v137
    %v140 = vsub.s32 4, %v116
    %v141 = vsel %vm56, %v140, %v116
    %v142 = vsel %vm55, %v50, %v139
    %v143 = vsel %vm55, 0, %v141
    %v144 = vcosq.f32.pop %v142
    %v145 = vsinq.f32.pop %v142
    %vm146 = vweird.f32 %v50
    %v147 = vadd.s32 %v143, 3
    %v148 = vand.u32 %v147, 3
    %vm149 = vcmp.lt.s32.totalorder %v148, 2
    %vm150 = vcmp.eq.s32.totalorder %v148, 0
    %v151 = vxor.u32 %v145, 2147483648
    %v152 = vsel %vm150, %v144, %v151
    %vm153 = vcmp.eq.s32.totalorder %v148, 2
    %v154 = vxor.u32 %v144, 2147483648
    %v155 = vsel %vm153, %v154, %v145
    %v156 = vsel %vm149, %v152, %v155
    %v157 = vsel %vm146, nan, %v156
    %v158 = vand.u32 2147483647, %v50
    %vm159 = vcmp.le.f32.partialorder %v158, 0.7853982
    %vm160 = vcmp.lt.s32.totalorder %v50, 0
    %v161 = vand.u32 %v50, 2139095040
    %v162 = vshrl.u32 %v161, 23
    %v163 = vsub.s32 %v162, 127
    %v164 = vand.u32 2147483647, %v50
    %v165 = vand.u32 %v164, 8388607
    %v166 = vor.u32 %v165, 8388608
    %v167 = vsub.s32 0, %v166
    %v168 = vadd.s32 %v163, 1
    %vm169 = vcmp.gt.s32.totalorder %v168, 0
    %v170 = vsel %vm169, %v168, 0
    %v171 = vshrl.u32 %v170, 5
    %v172 = vand.u32 %v170, 31
    %v173 = vsub.s32 32, %v172
    %v174 = vshrl.u32 683565275, %v173
    %v175 = vshll.u32 683565275, %v172
    %v176 = vshrl.u32 2475754826, %v173
    %v177 = vor.u32 %v175, %v176
    %v178 = vshll.u32 2475754826, %v172
    %v179 = vshrl.u32 2131351028, %v173
    %v180 = vor.u32 %v178, %v179
    %v181 = vshll.u32 2131351028, %v172
    %v182 = vshrl.u32 2102212464, %v173
    %v183 = vor.u32 %v181, %v182
    %v184 = vshll.u32 2102212464, %v172
    %v185 = vshrl.u32 920167782, %v173
    %v186 = vor.u32 %v184, %v185
    %v187 = vshll.u32 920167782, %v172
    %v188 = vshrl.u32 1326507024, %v173
    %v189 = vor.u32 %v187, %v188
    %vm190 = vcmp.lt.s32.totalorder %v171, 1
    %vm191 = vcmp.lt.s32.totalorder %v171, 2
    %vm192 = vcmp.lt.s32.totalorder %v171, 3
    %vm193 = vcmp.lt.s32.totalorder %v171, 4
    %v194 = vsel %vm190, %v174, %v177
    %v195 = vsel %vm193, %v183, 2102212464
    %v196 = vsel %vm192, %v180, %v195
    %v197 = vsel %vm191, %v194, %v196
    %v198 = vsel %vm190, %v177, %v180
    %v199 = vsel %vm193, %v186, 920167782
    %v200 = vsel %vm192, %v183, %v199
    %v201 = vsel %vm191, %v198, %v200
    %v202 = vsel %vm190, %v180, %v183
    %v203 = vsel %vm193, %v189, 1326507024
    %v204 = vsel %vm192, %v186, %v203
    %v205 = vsel %vm191, %v202, %v204
    %v206 = vshll.u32 %v166, 8
    %v207 = vmul.u32.u64.compose %v206, %v205
    %v208 = vextract.low.u32 %v207
    %v209 = vextract.high.u32 %v207
    %v210 = vmul.u32.u64.compose %v206, %v201
    %v211 = vextract.low.u32 %v210
    %v212 = vextract.high.u32 %v210
    %v213 = vmul.u32 %v206, %v197
    %v214 = vadd.s32 %v209, %v211
    %vm215 = vc.u32 %v209, %v211
    %v216 = vadd.s32 %v212, 1
    %v217 = vsel %vm215, %v216, %v212
    %v218 = vadd.s32 %v213, %v217
    %v219 = vadd.s32 %v218, 536870912
    %v220 = vshrl.u32 %v219, 30
    %v221 = vshll.u32 %v220, 30
    %v222 = vsub.s32 %v218, %v221
    %vm223 = vcmp.lt.s32.totalorder %v222, 0
    %v224 = vsub.s32 0, %v222
    %v225 = vsel %vm223, %v224, %v222
    %v226 = vclz %v225
    %v227 = vsub.s32 %v226, 2
    %vm228 = vcmp.gt.s32.totalorder 0, %v227
    %v229 = vsel %vm228, 0, %v227
    %v230 = vsub.s32 32, %v229
    %v231 = vshll.u32 %v222, %v229
    %v232 = vshrl.u32 %v214, %v230
    %v233 = vor.u32 %v231, %v232
    %v234 = vsub.s32 4294967266, %v229
    %v235 = vadd.s32 %v234, 127
    %v236 = vshll.u32 %v235, 23
    %v237 = vor.u32 4788187, %v236
    %v238 = vand.u32 2147483647, %v237
    %v240 = vcvt.s32.f32 %v233
    %v241 = vmul.f32 %v240, %v238
    %v242 = vxor.u32 %v241, 2147483648
    %v243 = vsel %vm160, %v242, %v241
    %v244 = vsub.s32 4, %v220
    %v245 = vsel %vm160, %v244, %v220
    %v246 = vsel %vm159, %v50, %v243
    %v247 = vsel %vm159, 0, %v245
    %v248 = vcosq.f32.pop %v246
    %v249 = vsinq.f32.pop %v246
    %vm250 = vweird.f32 %v50
    %v251 = vand.u32 %v247, 3
    %vm252 = vcmp.lt.s32.totalorder %v251, 2
    %vm253 = vcmp.eq.s32.totalorder %v251, 0
    %v254 = vxor.u32 %v249, 2147483648
    %v255 = vsel %vm253, %v248, %v254
    %vm256 = vcmp.eq.s32.totalorder %v251, 2
    %v257 = vxor.u32 %v248, 2147483648
    %v258 = vsel %vm256, %v257, %v249
    %v259 = vsel %vm252, %v255, %v258
    %v260 = vsel %vm250, nan, %v259
    %v261 = vsel %vm53, %v157, %v260
    %s262 = sld [smem:[#allocation2]]
    %s263 = sld [smem:[#allocation3]]
    %v264 = vld [vmem:[%s2] sm:$0xff]
    %v265 = vld [vmem:[%s2 + $0x8] sm:$0xff]
    %v266 = vld [vmem:[%s2 + $0x10] sm:$0xff]
    %v267 = vld [vmem:[%s2 + $0x18] sm:$0xff]
    %v268 = vld [vmem:[%s3] sm:$0xff]
    %v269 = vld [vmem:[%s3 + $0x8] sm:$0xff]
    %v270 = vld [vmem:[%s3 + $0x10] sm:$0xff]
    %v271 = vld [vmem:[%s3 + $0x18] sm:$0xff]
    %273 = vset.pattern.permute.xlu0 0
    %274 = vperm.xlu0 %273, %v268
    %v275 = vpop.permute.xlu0 %274
    %278 = vset.pattern.permute.xlu0 0
    %279 = vperm.xlu0 %278, %v269
    %v280 = vpop.permute.xlu0 %279
    %283 = vset.pattern.permute.xlu0 0
    %284 = vperm.xlu0 %283, %v270
    %v285 = vpop.permute.xlu0 %284
    %288 = vset.pattern.permute.xlu0 0
    %289 = vperm.xlu0 %288, %v271
    %v290 = vpop.permute.xlu0 %289
    %vm292 = vcmask 130048
    %v294 = vsel %vm292, %v264, 0
    %v297 = vsel %vm292, %v265, 0
    %v300 = vsel %vm292, %v266, 0
    %v303 = vsel %vm292, %v267, 0
    %305 = vmatprep.subr.mxu0 0.0
    %306 = vmatpush1.msra.mxu0 %v38
    %307 = vmatprep.subr.mxu0 0.0
    %308 = vmatpush1.msra.mxu0 %v261
    %309 = vmatprep.subr.mxu0 0.0
    %310 = vmatpush1.msra.mxu0 0.0
    %311 = vmatprep.subr.mxu0 0.0
    %312 = vmatpush1.msra.mxu0 0.0
    %313 = vmatprep.subr.mxu0 0.0
    %314 = vmatpush1.msra.mxu0 0.0
    %315 = vmatprep.subr.mxu0 0.0
    %316 = vmatpush1.msra.mxu0 0.0
    %317 = vmatprep.subr.mxu0 0.0
    %318 = vmatpush1.msra.mxu0 0.0
    %319 = vmatprep.subr.mxu0 0.0
    %320 = vmatpush1.msra.mxu0 0.0
    %321 = vmatprep.subr.mxu0 0.0
    %322 = vmatpush1.msra.mxu0 0.0
    %323 = vmatprep.subr.mxu0 0.0
    %324 = vmatpush1.msra.mxu0 0.0
    %325 = vmatprep.subr.mxu0 0.0
    %326 = vmatpush1.msra.mxu0 0.0
    %327 = vmatprep.subr.mxu0 0.0
    %328 = vmatpush1.msra.mxu0 0.0
    %329 = vmatprep.subr.mxu0 0.0
    %330 = vmatpush1.msra.mxu0 0.0
    %331 = vmatprep.subr.mxu0 0.0
    %332 = vmatpush1.msra.mxu0 0.0
    %333 = vmatprep.subr.mxu0 0.0
    %334 = vmatpush1.msra.mxu0 0.0
    %335 = vmatprep.subr.mxu0 0.0
    %336 = vmatpush1.msra.mxu0 0.0
    %337 = vmatprep.subr.mxu0 0.0
    %338 = vmatpush1.msra.mxu0 0.0
    %339 = vmatprep.subr.mxu0 0.0
    %340 = vmatpush1.msra.mxu0 0.0
    %341 = vmatprep.subr.mxu0 0.0
    %342 = vmatpush1.msra.mxu0 0.0
    %343 = vmatprep.subr.mxu0 0.0
    %344 = vmatpush1.msra.mxu0 0.0
    %345 = vmatprep.subr.mxu0 0.0
    %346 = vmatpush1.msra.mxu0 0.0
    %347 = vmatprep.subr.mxu0 0.0
    %348 = vmatpush1.msra.mxu0 0.0
    %349 = vmatprep.subr.mxu0 0.0
    %350 = vmatpush1.msra.mxu0 0.0
    %351 = vmatprep.subr.mxu0 0.0
    %352 = vmatpush1.msra.mxu0 0.0
    %353 = vmatprep.subr.mxu0 0.0
    %354 = vmatpush1.msra.mxu0 0.0
    %355 = vmatprep.subr.mxu0 0.0
    %356 = vmatpush1.msra.mxu0 0.0
    %357 = vmatprep.subr.mxu0 0.0
    %358 = vmatpush1.msra.mxu0 0.0
    %359 = vmatprep.subr.mxu0 0.0
    %360 = vmatpush1.msra.mxu0 0.0
    %361 = vmatprep.subr.mxu0 0.0
    %362 = vmatpush1.msra.mxu0 0.0
    %363 = vmatprep.subr.mxu0 0.0
    %364 = vmatpush1.msra.mxu0 0.0
    %365 = vmatprep.subr.mxu0 0.0
    %366 = vmatpush1.msra.mxu0 0.0
    %367 = vmatprep.subr.mxu0 0.0
    %368 = vmatpush1.msra.mxu0 0.0
    %369 = vmatprep.mubr.f32.mxu0 0.0
    %370 = vmatmul.mubr.f32.gmra.mrb[0].mxu0 %v294
    %v371 = vpop.f32.mrb[0].mxu0
    %v372 = vadd.f32 %v275, %v371
    %v373 = vpop.f32.mrb[0].mxu0
    %374 = vmatprep.mubr.f32.mxu0 0.0
    %375 = vmatmul.mubr.f32.gmra.mrb[0].mxu0 %v297
    %v376 = vpop.f32.mrb[0].mxu0
    %v377 = vadd.f32 %v280, %v376
    %v378 = vpop.f32.mrb[0].mxu0
    %379 = vmatprep.mubr.f32.mxu0 0.0
    %380 = vmatmul.mubr.f32.gmra.mrb[0].mxu0 %v300
    %v381 = vpop.f32.mrb[0].mxu0
    %v382 = vadd.f32 %v285, %v381
    %v383 = vpop.f32.mrb[0].mxu0
    %384 = vmatprep.mubr.f32.mxu0 0.0
    %385 = vmatmul.mubr.f32.gmra.mrb[0].mxu0 %v303
    %v386 = vpop.f32.mrb[0].mxu0
    %v387 = vadd.f32 %v290, %v386
    %v388 = vpop.f32.mrb[0].mxu0
    %389 = vdwg.mxu0
    %vm390 = vcmp.ge.f32.partialorder %v372, 0.0
    %vm391 = vcmp.ge.f32.partialorder %v377, 0.0
    %vm392 = vcmp.ge.f32.partialorder %v382, 0.0
    %vm393 = vcmp.ge.f32.partialorder %v387, 0.0
    %v394 = vstv %s262
    %v395 = vmul.f32 %v394, %v372
    %v396 = vmul.f32 %v394, %v377
    %v397 = vmul.f32 %v394, %v382
    %v398 = vmul.f32 %v394, %v387
    %v399 = vsel %vm390, %v372, %v395
    %v400 = vsel %vm391, %v377, %v396
    %v401 = vsel %vm392, %v382, %v397
    %v402 = vsel %vm393, %v387, %v398
    %v403 = vld [vmem:[%s5] sm:$0xff]
    %v404 = vld [vmem:[%s5 + $0x8] sm:$0xff]
    %v405 = vld [vmem:[%s5 + $0x10] sm:$0xff]
    %v406 = vld [vmem:[%s5 + $0x18] sm:$0xff]
    %v407 = vld [vmem:[%s6] sm:$0xff]
    %v408 = vld [vmem:[%s6 + $0x8] sm:$0xff]
    %v409 = vld [vmem:[%s6 + $0x10] sm:$0xff]
    %v410 = vld [vmem:[%s6 + $0x18] sm:$0xff]
    %412 = vset.pattern.permute.xlu0 0
    %413 = vperm.xlu0 %412, %v407
    %v414 = vpop.permute.xlu0 %413
    %417 = vset.pattern.permute.xlu0 0
    %418 = vperm.xlu0 %417, %v408
    %v419 = vpop.permute.xlu0 %418
    %422 = vset.pattern.permute.xlu0 0
    %423 = vperm.xlu0 %422, %v409
    %v424 = vpop.permute.xlu0 %423
    %427 = vset.pattern.permute.xlu0 0
    %428 = vperm.xlu0 %427, %v410
    %v429 = vpop.permute.xlu0 %428
    %vm431 = vcmask 261120
    %v433 = vsel %vm431, %v403, 0
    %v436 = vsel %vm431, %v404, 0
    %v439 = vsel %vm431, %v405, 0
    %v442 = vsel %vm431, %v406, 0
    %444 = vmatprep.subr.mxu0 0.0
    %445 = vmatpush1.msra.mxu0 %v399
    %446 = vmatprep.subr.mxu0 0.0
    %447 = vmatpush1.msra.mxu0 %v400
    %448 = vmatprep.subr.mxu0 0.0
    %449 = vmatpush1.msra.mxu0 %v401
    %450 = vmatprep.subr.mxu0 0.0
    %451 = vmatpush1.msra.mxu0 %v402
    %452 = vmatprep.subr.mxu0 0.0
    %453 = vmatpush1.msra.mxu0 0.0
    %454 = vmatprep.subr.mxu0 0.0
    %455 = vmatpush1.msra.mxu0 0.0
    %456 = vmatprep.subr.mxu0 0.0
    %457 = vmatpush1.msra.mxu0 0.0
    %458 = vmatprep.subr.mxu0 0.0
    %459 = vmatpush1.msra.mxu0 0.0
    %460 = vmatprep.subr.mxu0 0.0
    %461 = vmatpush1.msra.mxu0 0.0
    %462 = vmatprep.subr.mxu0 0.0
    %463 = vmatpush1.msra.mxu0 0.0
    %464 = vmatprep.subr.mxu0 0.0
    %465 = vmatpush1.msra.mxu0 0.0
    %466 = vmatprep.subr.mxu0 0.0
    %467 = vmatpush1.msra.mxu0 0.0
    %468 = vmatprep.subr.mxu0 0.0
    %469 = vmatpush1.msra.mxu0 0.0
    %470 = vmatprep.subr.mxu0 0.0
    %471 = vmatpush1.msra.mxu0 0.0
    %472 = vmatprep.subr.mxu0 0.0
    %473 = vmatpush1.msra.mxu0 0.0
    %474 = vmatprep.subr.mxu0 0.0
    %475 = vmatpush1.msra.mxu0 0.0
    %476 = vmatprep.subr.mxu0 0.0
    %477 = vmatpush1.msra.mxu0 0.0
    %478 = vmatprep.subr.mxu0 0.0
    %479 = vmatpush1.msra.mxu0 0.0
    %480 = vmatprep.subr.mxu0 0.0
    %481 = vmatpush1.msra.mxu0 0.0
    %482 = vmatprep.subr.mxu0 0.0
    %483 = vmatpush1.msra.mxu0 0.0
    %484 = vmatprep.subr.mxu0 0.0
    %485 = vmatpush1.msra.mxu0 0.0
    %486 = vmatprep.subr.mxu0 0.0
    %487 = vmatpush1.msra.mxu0 0.0
    %488 = vmatprep.subr.mxu0 0.0
    %489 = vmatpush1.msra.mxu0 0.0
    %490 = vmatprep.subr.mxu0 0.0
    %491 = vmatpush1.msra.mxu0 0.0
    %492 = vmatprep.subr.mxu0 0.0
    %493 = vmatpush1.msra.mxu0 0.0
    %494 = vmatprep.subr.mxu0 0.0
    %495 = vmatpush1.msra.mxu0 0.0
    %496 = vmatprep.subr.mxu0 0.0
    %497 = vmatpush1.msra.mxu0 0.0
    %498 = vmatprep.subr.mxu0 0.0
    %499 = vmatpush1.msra.mxu0 0.0
    %500 = vmatprep.subr.mxu0 0.0
    %501 = vmatpush1.msra.mxu0 0.0
    %502 = vmatprep.subr.mxu0 0.0
    %503 = vmatpush1.msra.mxu0 0.0
    %504 = vmatprep.subr.mxu0 0.0
    %505 = vmatpush1.msra.mxu0 0.0
    %506 = vmatprep.subr.mxu0 0.0
    %507 = vmatpush1.msra.mxu0 0.0
    %508 = vmatprep.mubr.f32.mxu0 0.0
    %509 = vmatmul.mubr.f32.gmra.mrb[0].mxu0 %v433
    %v510 = vpop.f32.mrb[0].mxu0
    %v511 = vadd.f32 %v414, %v510
    %v512 = vpop.f32.mrb[0].mxu0
    %513 = vmatprep.mubr.f32.mxu0 0.0
    %514 = vmatmul.mubr.f32.gmra.mrb[0].mxu0 %v436
    %v515 = vpop.f32.mrb[0].mxu0
    %v516 = vadd.f32 %v419, %v515
    %v517 = vpop.f32.mrb[0].mxu0
    %518 = vmatprep.mubr.f32.mxu0 0.0
    %519 = vmatmul.mubr.f32.gmra.mrb[0].mxu0 %v439
    %v520 = vpop.f32.mrb[0].mxu0
    %v521 = vadd.f32 %v424, %v520
    %v522 = vpop.f32.mrb[0].mxu0
    %523 = vmatprep.mubr.f32.mxu0 0.0
    %524 = vmatmul.mubr.f32.gmra.mrb[0].mxu0 %v442
    %v525 = vpop.f32.mrb[0].mxu0
    %v526 = vadd.f32 %v429, %v525
    %v527 = vpop.f32.mrb[0].mxu0
    %528 = vdwg.mxu0
    %vm529 = vcmp.ge.f32.partialorder %v511, 0.0
    %vm530 = vcmp.ge.f32.partialorder %v516, 0.0
    %vm531 = vcmp.ge.f32.partialorder %v521, 0.0
    %vm532 = vcmp.ge.f32.partialorder %v526, 0.0
    %v533 = vstv %s263
    %v534 = vmul.f32 %v533, %v511
    %v535 = vmul.f32 %v533, %v516
    %v536 = vmul.f32 %v533, %v521
    %v537 = vmul.f32 %v533, %v526
    %v538 = vsel %vm529, %v511, %v534
    %v539 = vsel %vm530, %v516, %v535
    %v540 = vsel %vm531, %v521, %v536
    %v541 = vsel %vm532, %v526, %v537
    %v542 = vld [vmem:[%s8] sm:$0xf]
    %v543 = vld [vmem:[%s9] sm:$0xf]
    %545 = vset.pattern.permute.xlu0 0
    %546 = vperm.xlu0 %545, %v543
    %v547 = vpop.permute.xlu0 %546
    %v550 = vsel %vm431, %v542, 0
    %552 = vmatprep.subr.mxu0 0.0
    %553 = vmatpush1.msra.mxu0 %v538
    %554 = vmatprep.subr.mxu0 0.0
    %555 = vmatpush1.msra.mxu0 %v539
    %556 = vmatprep.subr.mxu0 0.0
    %557 = vmatpush1.msra.mxu0 %v540
    %558 = vmatprep.subr.mxu0 0.0
    %559 = vmatpush1.msra.mxu0 %v541
    %560 = vmatprep.subr.mxu0 0.0
    %561 = vmatpush1.msra.mxu0 0.0
    %562 = vmatprep.subr.mxu0 0.0
    %563 = vmatpush1.msra.mxu0 0.0
    %564 = vmatprep.subr.mxu0 0.0
    %565 = vmatpush1.msra.mxu0 0.0
    %566 = vmatprep.subr.mxu0 0.0
    %567 = vmatpush1.msra.mxu0 0.0
    %568 = vmatprep.subr.mxu0 0.0
    %569 = vmatpush1.msra.mxu0 0.0
    %570 = vmatprep.subr.mxu0 0.0
    %571 = vmatpush1.msra.mxu0 0.0
    %572 = vmatprep.subr.mxu0 0.0
    %573 = vmatpush1.msra.mxu0 0.0
    %574 = vmatprep.subr.mxu0 0.0
    %575 = vmatpush1.msra.mxu0 0.0
    %576 = vmatprep.subr.mxu0 0.0
    %577 = vmatpush1.msra.mxu0 0.0
    %578 = vmatprep.subr.mxu0 0.0
    %579 = vmatpush1.msra.mxu0 0.0
    %580 = vmatprep.subr.mxu0 0.0
    %581 = vmatpush1.msra.mxu0 0.0
    %582 = vmatprep.subr.mxu0 0.0
    %583 = vmatpush1.msra.mxu0 0.0
    %584 = vmatprep.subr.mxu0 0.0
    %585 = vmatpush1.msra.mxu0 0.0
    %586 = vmatprep.subr.mxu0 0.0
    %587 = vmatpush1.msra.mxu0 0.0
    %588 = vmatprep.subr.mxu0 0.0
    %589 = vmatpush1.msra.mxu0 0.0
    %590 = vmatprep.subr.mxu0 0.0
    %591 = vmatpush1.msra.mxu0 0.0
    %592 = vmatprep.subr.mxu0 0.0
    %593 = vmatpush1.msra.mxu0 0.0
    %594 = vmatprep.subr.mxu0 0.0
    %595 = vmatpush1.msra.mxu0 0.0
    %596 = vmatprep.subr.mxu0 0.0
    %597 = vmatpush1.msra.mxu0 0.0
    %598 = vmatprep.subr.mxu0 0.0
    %599 = vmatpush1.msra.mxu0 0.0
    %600 = vmatprep.subr.mxu0 0.0
    %601 = vmatpush1.msra.mxu0 0.0
    %602 = vmatprep.subr.mxu0 0.0
    %603 = vmatpush1.msra.mxu0 0.0
    %604 = vmatprep.subr.mxu0 0.0
    %605 = vmatpush1.msra.mxu0 0.0
    %606 = vmatprep.subr.mxu0 0.0
    %607 = vmatpush1.msra.mxu0 0.0
    %608 = vmatprep.subr.mxu0 0.0
    %609 = vmatpush1.msra.mxu0 0.0
    %610 = vmatprep.subr.mxu0 0.0
    %611 = vmatpush1.msra.mxu0 0.0
    %612 = vmatprep.subr.mxu0 0.0
    %613 = vmatpush1.msra.mxu0 0.0
    %614 = vmatprep.subr.mxu0 0.0
    %615 = vmatpush1.msra.mxu0 0.0
    %616 = vmatprep.mubr.f32.mxu0 0.0
    %617 = vmatmul.mubr.f32.gmra.mrb[0].mxu0 %v550
    %v618 = vpop.f32.mrb[0].mxu0
    %v619 = vadd.f32 %v547, %v618
    %v620 = vpop.f32.mrb[0].mxu0
    %621 = vdwg.mxu0
    %622 = vst [vmem:[#allocation4] sm:$0xf] %v619
    // Predicated region
    $region42: #{tpu_custom_call.1} parent=1 // pred_check
      _
    $region43: #{tpu_custom_call.1} parent=1 // pred_check_branch
      %624 = sbr.rel (0) target = $region45
    $region44: #{tpu_custom_call.1} parent=1 // pred_region
      %s626 = ssub.s32 64, 64
      %627 = vsyncadd [#allocation5], %s626
      %s629 = sshll.u32 [#allocation4], 4
      %s630 = int_to_ptr.vmem [resolvable:$true] %s629
      %632 = dma.vmem_to_hbm [thread:$0]  %s630, 64, %s10, [#allocation5]
    $region45: #{tpu_custom_call.1} parent=1 // pred_fallthru
      _
    // Predicated region
    $region46: #{tpu_custom_call.1} parent=1 // pred_check
      _
    $region47: #{tpu_custom_call.1} parent=1 // pred_check_branch
      %634 = sbr.rel (0) target = $region49
    $region48: #{tpu_custom_call.1} parent=1 // pred_region
      %635 = dma.done [#allocation5], 64
    $region49: #{tpu_custom_call.1} parent=1 // pred_fallthru
      _
    %636 = vsyncpa [#allocation5], 1

</llo_original>
